<compile_context>
chip_gen: v6e
topology: v6e:2x2x1
jax: 0.10.0
libtpu: 0.0.40
codegen_flags: <defaults>
</compile_context>

<pallas_src>
import functools
import math

import jax
import jax.numpy as jnp
from jax import lax
from jax.experimental import pallas as pl
from jax.experimental.pallas import tpu as pltpu

_LANES = 128
_SUBLANES = 8
# Byte budget for the double-buffered blocked operands (2 inputs [+ 1 output]).
# Conservative against v7x's 64 MiB physical / 32 MiB default-scoped VMEM.
_VMEM_BLOCK_BUDGET = 24 * 1024 * 1024
_VMEM_LIMIT_BYTES = 32 * 1024 * 1024


def _soft_bce_elementwise(x_raw, t_raw, smooth_factor, ignore_index):
    """Elementwise soft-BCE-with-logits (reduction='none'), f32 math.

    The cast to f32 happens here (inside the kernel) so HBM traffic stays in the
    input dtype. The ignore_index comparison is done on the raw (uncast) target,
    matching the PyTorch module.
    """
    x = x_raw.astype(jnp.float32)
    t = t_raw.astype(jnp.float32)
    if smooth_factor is not None:
        sf = float(smooth_factor)
        # (1-t)*sf + t*(1-sf) fused to 2 VPU ops (constant folded in Python).
        y = sf + t * (1.0 - 2.0 * sf)
    else:
        y = t
    # Stable binary_cross_entropy_with_logits (weight=None, pos_weight=None):
    #   loss = max(x, 0) - x*y + log(1 + exp(-|x|))
    loss = jnp.maximum(x, 0.0) - x * y + jnp.log1p(jnp.exp(-jnp.abs(x)))
    if ignore_index is not None:
        keep = (t_raw != ignore_index)
        # select (not multiply): a +/-inf or NaN logit at an ignored position
        # must not poison the reduction.
        loss = jnp.where(keep, loss, 0.0)
    return loss


def _pick_block_rows(rows, bytes_per_row, budget, requested):
    """Pick the block row count.

    Big enough to amortize the ~0.35us/step overhead (>= ~4 MiB of DMA per input
    block), small enough that the double-buffered blocks fit `budget`, and a
    multiple of 64 when possible so the in-kernel partial reduce has 8-way ILP.
    """
    if requested is not None:
        br = int(requested)
        if br >= rows:
            return rows                               # one block == full dim
        return min(rows, max(_SUBLANES, (br // _SUBLANES) * _SUBLANES))
    cap = max(_SUBLANES, int(budget) // (int(bytes_per_row) * 2))  # 2 pipeline bufs
    if rows <= cap and rows <= 256:
        return rows                                   # tiny problem: single block
    target = min(cap, max(64, pl.cdiv(rows, 4)))      # >= ~4 steps for overlap
    if target >= 64:
        target = (target // 64) * 64
    else:
        target = max(_SUBLANES, (target // _SUBLANES) * _SUBLANES)
    return min(target, rows)


def _make_partial_sum_kernel(smooth_factor, ignore_index, block_rows, p_rows,
                             lanes, valid_elems, need_mask):
    """Each grid step writes a (p_rows, lanes) f32 partial sum of its block."""
    groups = block_rows // p_rows
    full_rows = valid_elems // lanes        # fully-valid rows of the 2-D view
    rem_lanes = valid_elems % lanes         # extra valid lanes on row `full_rows`

    def _reduce(v):
        if groups == 1:
            return v
        # (block_rows, lanes) -> (groups, p_rows, lanes) -> (p_rows, lanes):
        # p_rows/8 independent accumulator vregs, so the adds are not one long
        # latency chain (matters on v7x / bf16 where the kernel is VALU-bound).
        return jnp.sum(v.reshape(groups, p_rows, lanes), axis=0)

    def kernel(x_ref, t_ref, p_ref):
        loss = _soft_bce_elementwise(x_ref[...], t_ref[...], smooth_factor,
                                     ignore_index)
        if not need_mask:
            p_ref[...] = _reduce(loss)
            return

        # Only the LAST block can contain rows/lanes past the valid data, so the
        # iota/compare/select overhead is gated off every other step.
        last = pl.num_programs(0) - 1
        step = pl.program_id(0)

        @pl.when(step < last)
        def _():
            p_ref[...] = _reduce(loss)

        @pl.when(step == last)
        def _():
            row = step * block_rows + lax.broadcasted_iota(
                jnp.int32, (block_rows, lanes), 0)
            valid = row < full_rows
            if rem_lanes:
                lane = lax.broadcasted_iota(jnp.int32, (block_rows, lanes), 1)
                valid = valid | ((row == full_rows) & (lane < rem_lanes))
            # select (not multiply) so garbage NaNs in invalid rows can't leak.
            p_ref[...] = _reduce(jnp.where(valid, loss, 0.0))

    return kernel


def _make_eltwise_kernel(smooth_factor, ignore_index):
    """reduction='none' path: write elementwise loss tiles.

    No masking needed: out-of-bounds rows of a partial last block are never
    written back by the pipeline, and no pad elements exist on the zero-copy paths.
    """
    def kernel(x_ref, t_ref, o_ref):
        loss = _soft_bce_elementwise(x_ref[...], t_ref[...], smooth_factor,
                                     ignore_index)
        o_ref[...] = loss.astype(o_ref.dtype)
    return kernel


@functools.partial(
    jax.jit,
    static_argnames=("ignore_index", "smooth_factor", "reduction", "block_rows",
                     "vmem_block_budget"),
)
def soft_bce_with_logits_loss(
    logits,
    target,
    *,
    ignore_index=-100,
    smooth_factor=None,
    reduction="mean",
    block_rows=None,          # optional manual override (auto-picked if None)
    vmem_block_budget=None,   # testing / tuning hook
):
    if reduction not in ("mean", "sum", "none"):
        raise ValueError(f"unsupported reduction: {reduction!r}")

    orig_shape = tuple(logits.shape)
    total = int(math.prod(orig_shape)) if orig_shape else 1

    if total == 0:
        if reduction == "none":
            return jnp.zeros(orig_shape, logits.dtype)
        empty = jnp.float32(0.0) if reduction == "sum" else jnp.float32(jnp.nan)
        return empty.astype(logits.dtype)

    budget = int(vmem_block_budget) if vmem_block_budget else _VMEM_BLOCK_BUDGET

    x_item = jnp.dtype(logits.dtype).itemsize
    t_item = jnp.dtype(target.dtype).itemsize
    o_item = x_item if reduction == "none" else 0
    bytes_per_elem = x_item + t_item + o_item

    # ---- zero-copy 2-D view selection (inputs stay in their native dtype) ----
    pad_fallback = False
    if total % _LANES == 0:
        # Lane-dense flat view: free reshape of the contiguous row-major array.
        arr_rows, lanes = total // _LANES, _LANES
        x2 = logits.reshape(arr_rows, lanes)
        t2 = target.reshape(arr_rows, lanes)
    else:
        last = int(orig_shape[-1]) if len(orig_shape) >= 1 else 1
        lead = total // last
        if min(_SUBLANES, lead) * last * bytes_per_elem * 2 <= budget:
            # Ragged total: tile the original (prod(leading), last) view directly
            # (lane-sparse if last < 128, but zero extra HBM traffic).
            arr_rows, lanes = lead, last
            x2 = logits.reshape(arr_rows, lanes)
            t2 = target.reshape(arr_rows, lanes)
        else:
            # Last dim too large for a VMEM block: pad (<128 elems) to a lane
            # boundary. Only this rare path pays an extra HBM copy.
            pad = _LANES - total % _LANES
            arr_rows, lanes = (total + pad) // _LANES, _LANES
            x2 = jnp.pad(logits.reshape(-1), (0, pad)).reshape(arr_rows, lanes)
            t2 = jnp.pad(target.reshape(-1), (0, pad)).reshape(arr_rows, lanes)
            pad_fallback = True

    blk_rows = _pick_block_rows(arr_rows, lanes * bytes_per_elem, budget, block_rows)
    n_tiles = pl.cdiv(arr_rows, blk_rows)
    need_mask = n_tiles * blk_rows * lanes > total   # only the last block can overrun

    if blk_rows % 64 == 0:
        p_rows = 64              # 8 independent accumulator vregs in the reduce
    elif blk_rows % _SUBLANES == 0:
        p_rows = _SUBLANES
    else:
        p_rows = blk_rows        # single (small/odd) block: partial == (masked) loss

    in_specs = [
        pl.BlockSpec((blk_rows, lanes), lambda i: (i, 0)),
        pl.BlockSpec((blk_rows, lanes), lambda i: (i, 0)),
    ]
    cparams = pltpu.CompilerParams(
        dimension_semantics=("parallel",),       # both TensorCores on v7x
        vmem_limit_bytes=_VMEM_LIMIT_BYTES,      # > v5e's 16 MiB default scoped limit
    )

    if reduction in ("mean", "sum"):
        partials = pl.pallas_call(
            _make_partial_sum_kernel(smooth_factor, ignore_index, blk_rows, p_rows,
                                     lanes, total, need_mask),
            out_shape=jax.ShapeDtypeStruct((n_tiles * p_rows, lanes), jnp.float32),
            grid_spec=pltpu.PrefetchScalarGridSpec(
                num_scalar_prefetch=0,
                grid=(n_tiles,),
                in_specs=in_specs,
                out_specs=pl.BlockSpec((p_rows, lanes), lambda i: (i, 0)),
            ),
            compiler_params=cparams,
        )(x2, t2)
        result = jnp.sum(partials)               # tiny XLA reduce over the partials
        if reduction == "mean":
            # Divide by the FULL element count (ignored positions included) — this
            # matches SoftBCEWithLogitsLoss's `loss.mean()` semantics.
            result = result * (1.0 / float(total))
        return result.astype(logits.dtype)

    out2 = pl.pallas_call(
        _make_eltwise_kernel(smooth_factor, ignore_index),
        out_shape=jax.ShapeDtypeStruct((arr_rows, lanes), logits.dtype),
        grid_spec=pltpu.PrefetchScalarGridSpec(
            num_scalar_prefetch=0,
            grid=(n_tiles,),
            in_specs=in_specs,
            out_specs=pl.BlockSpec((blk_rows, lanes), lambda i: (i, 0)),
        ),
        compiler_params=cparams,
    )(x2, t2)
    if pad_fallback:
        return out2.reshape(-1)[:total].reshape(orig_shape)
    return out2.reshape(orig_shape)              # same element count -> free reshape


def _reference(logits, target, *, ignore_index=-100, smooth_factor=None,
               reduction="mean"):
    x = logits.astype(jnp.float32)
    t = target.astype(jnp.float32)
    if smooth_factor is not None:
        y = (1.0 - t) * smooth_factor + t * (1.0 - smooth_factor)
    else:
        y = t
    loss = jnp.maximum(x, 0.0) - x * y + jnp.log1p(jnp.exp(-jnp.abs(x)))
    if ignore_index is not None:
        loss = loss * (target != ignore_index).astype(jnp.float32)
    if reduction == "mean":
        return loss.mean().astype(logits.dtype)
    if reduction == "sum":
        return loss.sum().astype(logits.dtype)
    return loss.astype(logits.dtype)


if __name__ == "__main__":
    key = jax.random.PRNGKey(0)
    k_x, k_t, k_ign, k_x2, k_t2, k_x3, k_t3, k_x4, k_t4 = jax.random.split(key, 9)

    # Test A: tile-aligned NCHW input, smoothing + ignore_index; mean / sum / none.
    N, C, H, W = 2, 4, 16, 16
    logits = jax.random.normal(k_x, (N, C, H, W), dtype=jnp.float32)
    target = jax.random.bernoulli(k_t, 0.5, (N, C, H, W)).astype(jnp.float32)
    ign = jax.random.bernoulli(k_ign, 0.1, (N, C, H, W))
    target = jnp.where(ign, jnp.float32(-100.0), target)

    cfg = dict(ignore_index=-100, smooth_factor=0.1)
    for red in ("mean", "sum", "none"):
        out = jax.block_until_ready(
            soft_bce_with_logits_loss(logits, target, reduction=red, **cfg))
        ref = _reference(logits, target, reduction=red, **cfg)
        assert out.shape == ref.shape, (red, out.shape, ref.shape)
        assert jnp.allclose(out, ref, rtol=1e-5, atol=1e-6), (red, out, ref)

    # Test B: ragged total (3315 elements) -> zero-copy (195, 17) view path.
    shape_b = (3, 5, 13, 17)
    logits_b = jax.random.normal(k_x2, shape_b, dtype=jnp.float32)
    target_b = jax.random.bernoulli(k_t2, 0.5, shape_b).astype(jnp.float32)
    for red in ("mean", "none"):
        out_b = jax.block_until_ready(
            soft_bce_with_logits_loss(logits_b, target_b, ignore_index=None,
                                      smooth_factor=None, reduction=red))
        ref_b = _reference(logits_b, target_b, ignore_index=None,
                           smooth_factor=None, reduction=red)
        assert out_b.shape == ref_b.shape, (red, out_b.shape, ref_b.shape)
        assert jnp.allclose(out_b, ref_b, rtol=1e-5, atol=1e-6), (red, out_b, ref_b)

    # Test C: bf16 logits stay bf16 in HBM (the f32 cast happens in-kernel).
    logits_c = logits.astype(jnp.bfloat16)
    out_c = jax.block_until_ready(
        soft_bce_with_logits_loss(logits_c, target, reduction="sum", **cfg))
    ref_c = _reference(logits_c, target, reduction="sum", **cfg)
    assert jnp.allclose(out_c.astype(jnp.float32), ref_c.astype(jnp.float32),
                        rtol=2e-2, atol=2e-2), (out_c, ref_c)

    # Test D: block override that does not divide the row count -> exercises the
    # pl.when-gated last-block mask (sum path) and partial output blocks ('none').
    shape_d = (1, 1, 40, 128)
    logits_d = jax.random.normal(k_x3, shape_d, dtype=jnp.float32)
    target_d = jax.random.bernoulli(k_t3, 0.5, shape_d).astype(jnp.float32)
    for red in ("mean", "none"):
        out_d = jax.block_until_ready(
            soft_bce_with_logits_loss(logits_d, target_d, reduction=red,
                                      block_rows=16, **cfg))
        ref_d = _reference(logits_d, target_d, reduction=red, **cfg)
        assert out_d.shape == ref_d.shape, (red, out_d.shape, ref_d.shape)
        assert jnp.allclose(out_d, ref_d, rtol=1e-5, atol=1e-6), (red, out_d, ref_d)

    # Test E: force the <128-element pad fallback by shrinking the block budget ->
    # exercises the lane-remainder mask and the output slice of that path.
    shape_e = (7, 33)
    logits_e = jax.random.normal(k_x4, shape_e, dtype=jnp.float32)
    target_e = jax.random.bernoulli(k_t4, 0.5, shape_e).astype(jnp.float32)
    for red in ("mean", "none"):
        out_e = jax.block_until_ready(
            soft_bce_with_logits_loss(logits_e, target_e, reduction=red,
                                      vmem_block_budget=1024, **cfg))
        ref_e = _reference(logits_e, target_e, reduction=red, **cfg)
        assert out_e.shape == ref_e.shape, (red, out_e.shape, ref_e.shape)
        assert jnp.allclose(out_e, ref_e, rtol=1e-5, atol=1e-6), (red, out_e, ref_e)

    print("KERNEL_OK")
</pallas_src>

<mosaic_0001>
module attributes {stable_mosaic.version = 11 : i64} {
  func.func @kernel(%arg0: i32, %arg1: memref<16x128xf32, #tpu.memory_space<vmem>>, %arg2: memref<16x128xf32, #tpu.memory_space<vmem>>, %arg3: memref<8x128xf32, #tpu.memory_space<vmem>>) attributes {dimension_semantics = [#tpu.dimension_semantics<parallel>], iteration_bounds = array<i64: 1>, scalar_prefetch = 0 : i64, scratch_operands = 0 : i64, tpu.core_type = #tpu.core_type<tc>, window_params = [{transform_indices = @transform_0, window_bounds = array<i64: 16, 128>}, {transform_indices = @transform_1, window_bounds = array<i64: 16, 128>}, {transform_indices = @transform_2, window_bounds = array<i64: 8, 128>}]} {
    %c0 = arith.constant 0 : index
    %c0_0 = arith.constant 0 : index
    %0 = vector.load %arg1[%c0, %c0_0] : memref<16x128xf32, #tpu.memory_space<vmem>>, vector<16x128xf32>
    %c0_1 = arith.constant 0 : index
    %c0_2 = arith.constant 0 : index
    %1 = vector.load %arg2[%c0_1, %c0_2] : memref<16x128xf32, #tpu.memory_space<vmem>>, vector<16x128xf32>
    %cst = arith.constant 8.000000e-01 : f32
    %2 = vector.broadcast %cst : f32 to vector<16x128xf32>
    %3 = arith.mulf %1, %2 : vector<16x128xf32>
    %cst_3 = arith.constant 1.000000e-01 : f32
    %4 = vector.broadcast %cst_3 : f32 to vector<16x128xf32>
    %5 = arith.addf %4, %3 : vector<16x128xf32>
    %cst_4 = arith.constant 0.000000e+00 : f32
    %6 = vector.broadcast %cst_4 : f32 to vector<16x128xf32>
    %7 = arith.maximumf %0, %6 : vector<16x128xf32>
    %8 = arith.mulf %0, %5 : vector<16x128xf32>
    %9 = arith.subf %7, %8 : vector<16x128xf32>
    %10 = math.absf %0 : vector<16x128xf32>
    %cst_5 = arith.constant 0.000000e+00 : f32
    %11 = vector.broadcast %cst_5 : f32 to vector<16x128xf32>
    %12 = arith.subf %11, %10 : vector<16x128xf32>
    %13 = math.exp %12 : vector<16x128xf32>
    %14 = math.log1p %13 : vector<16x128xf32>
    %15 = arith.addf %9, %14 : vector<16x128xf32>
    %cst_6 = arith.constant -1.000000e+02 : f32
    %16 = vector.broadcast %cst_6 : f32 to vector<16x128xf32>
    %17 = arith.cmpf one, %1, %16 : vector<16x128xf32>
    %cst_7 = arith.constant 0.000000e+00 : f32
    %18 = vector.broadcast %cst_7 : f32 to vector<16x128xf32>
    %19 = arith.select %17, %15, %18 : vector<16x128xi1>, vector<16x128xf32>
    %20 = vector.shape_cast %19 : vector<16x128xf32> to vector<2x8x128xf32>
    %cst_8 = arith.constant dense<0.000000e+00> : vector<8x128xf32>
    %21 = vector.multi_reduction <add>, %20, %cst_8 [0] : vector<2x8x128xf32> to vector<8x128xf32>
    %c0_9 = arith.constant 0 : index
    %c0_10 = arith.constant 0 : index
    %22 = vector.load %arg3[%c0_9, %c0_10] : memref<8x128xf32, #tpu.memory_space<vmem>>, vector<8x128xf32>
    tpu.vector_store %arg3[%c0_9, %c0_10], %21 {strides = array<i32>} : memref<8x128xf32, #tpu.memory_space<vmem>>, vector<8x128xf32>,
    return
  }
  func.func @transform_0(%arg0: i32) -> (i32, i32) {
    %c0_i32 = arith.constant 0 : i32
    %c0_i32_0 = arith.constant 0 : i32
    return %arg0, %c0_i32 : i32, i32
  }
  func.func @transform_1(%arg0: i32) -> (i32, i32) {
    %c0_i32 = arith.constant 0 : i32
    %c0_i32_0 = arith.constant 0 : i32
    return %arg0, %c0_i32 : i32, i32
  }
  func.func @transform_2(%arg0: i32) -> (i32, i32) {
    %c0_i32 = arith.constant 0 : i32
    %c0_i32_0 = arith.constant 0 : i32
    return %arg0, %c0_i32 : i32, i32
  }
}

</mosaic_0001>

<llo_original>
// kernel: soft_bce_with_logits_loss.1
$region0: #{soft_bce_with_logits_loss.1}
  #allocation0 [shape = 'u32[]', space=smem, size = 0x4, offset = 0x4, fixed_abs, tag = 'smem constant byte address 0x4 - core index']
  #allocation1 [shape = 'u32[144,128]{1,0:T(1,128)}', space=vmem, size = 0x12000, scoped, tag = 'internal scratch']
  %s0 = inlined_call_operand.vmem [shape: f32[16,128], index: 0, kind: input, shape index: {}]
  %s1 = inlined_call_operand.vmem [shape: f32[16,128], index: 1, kind: input, shape index: {}]
  %s2 = inlined_call_operand.vmem [shape: f32[8,128], index: 2, kind: output, shape index: {}]
  %s3 = sld [smem:[#allocation0]]
  $region18: #{soft_bce_with_logits_loss.1} parent=0
    _
  %s5 = ssub.s32 1, %s3
  %s6 = scalar_select 0, %s5, %s3
  // Predicated region
  $region2: #{soft_bce_with_logits_loss.1} parent=0 // pred_check
    _
  $region3: #{soft_bce_with_logits_loss.1} parent=0 // pred_check_branch
    %8 = sbr.rel (0) target = $region5
  $region4: #{soft_bce_with_logits_loss.1} parent=0 // pred_region
    _
  $region5: #{soft_bce_with_logits_loss.1} parent=0 // pred_fallthru
    _
  // Predicated region
  $region6: #{soft_bce_with_logits_loss.1} parent=0 // pred_check
    _
  $region7: #{soft_bce_with_logits_loss.1} parent=0 // pred_check_branch
    %10 = sbr.rel (0) target = $region9
  $region8: #{soft_bce_with_logits_loss.1} parent=0 // pred_region
    _
  $region9: #{soft_bce_with_logits_loss.1} parent=0 // pred_fallthru
    _
  %v11 = vld [vmem:[%s0] sm:$0xff]
  %v12 = vld [vmem:[%s0 + $0x8] sm:$0xff]
  %v13 = vld [vmem:[%s1] sm:$0xff]
  %v14 = vld [vmem:[%s1 + $0x8] sm:$0xff]
  %v15 = vmul.f32 %v13, 0.8
  %v16 = vmul.f32 %v14, 0.8
  %v17 = vadd.f32 %v15, 0.1
  %v18 = vadd.f32 %v16, 0.1
  %v19 = vmax.f32 %v11, 0.0
  %v20 = vmax.f32 %v12, 0.0
  %v21 = vmul.f32 %v11, %v17
  %v22 = vmul.f32 %v12, %v18
  %v23 = vsub.f32 %v19, %v21
  %v24 = vsub.f32 %v20, %v22
  %v25 = vand.u32 2147483647, %v11
  %v26 = vand.u32 2147483647, %v12
  %v27 = vsub.f32 0.0, %v25
  %v28 = vsub.f32 0.0, %v26
  %v29 = vmul.f32 %v27, 1.442695
  %v30 = vpow.pop %v29
  %v31 = vmul.f32 %v28, 1.442695
  %v32 = vpow.pop %v31
  %v33 = vadd.f32 %v30, 1.0
  %v34 = vlog2.pop %v33
  %v35 = vmul.f32 %v34, 0.6931472
  %v36 = vmul.f32 -0.5, %v30
  %v37 = vadd.f32 %v36, 1.0
  %v38 = vmul.f32 %v37, %v30
  %v39 = vand.u32 2147483647, %v30
  %vm40 = vcmp.lt.f32.partialorder %v39, 0.0004427343
  %v41 = vsel %vm40, %v38, %v35
  %v42 = vadd.f32 %v32, 1.0
  %v43 = vlog2.pop %v42
  %v44 = vmul.f32 %v43, 0.6931472
  %v45 = vmul.f32 -0.5, %v32
  %v46 = vadd.f32 %v45, 1.0
  %v47 = vmul.f32 %v46, %v32
  %v48 = vand.u32 2147483647, %v32
  %vm49 = vcmp.lt.f32.partialorder %v48, 0.0004427343
  %v50 = vsel %vm49, %v47, %v44
  %v51 = vadd.f32 %v23, %v41
  %v52 = vadd.f32 %v24, %v50
  %vm53 = vcmp.ne.f32.partialorder %v13, -100.0
  %vm54 = vcmp.ne.f32.partialorder %v14, -100.0
  %v55 = vsel %vm53, %v51, 0.0
  %v56 = vsel %vm54, %v52, 0.0
  %v57 = vadd.f32 %v55, %v56
  %58 = vst [vmem:[%s2] sm:$0xff] %v57
  // Predicated region
  $region10: #{soft_bce_with_logits_loss.1} parent=0 // pred_check
    _
  $region11: #{soft_bce_with_logits_loss.1} parent=0 // pred_check_branch
    %60 = sbr.rel (0) target = $region13
  $region12: #{soft_bce_with_logits_loss.1} parent=0 // pred_region
    _
  $region13: #{soft_bce_with_logits_loss.1} parent=0 // pred_fallthru
    _
  // Predicated region
  $region14: #{soft_bce_with_logits_loss.1} parent=0 // pred_check
    _
  $region15: #{soft_bce_with_logits_loss.1} parent=0 // pred_check_branch
    %62 = sbr.rel (0) target = $region17
  $region16: #{soft_bce_with_logits_loss.1} parent=0 // pred_region
    _
  $region17: #{soft_bce_with_logits_loss.1} parent=0 // pred_fallthru
    _

</llo_original>
